<compile_context>
chip_gen: v6e
topology: v6e:2x2x1
jax: 0.10.0
libtpu: 0.0.40
codegen_flags: <defaults>
</compile_context>

<pallas_src>
import functools

import jax
import jax.numpy as jnp
from jax import lax
from jax.experimental import pallas as pl
from jax.experimental.pallas import tpu as pltpu


def _sobel_kernel(x_ref, lmask_ref, rmask_ref, o_ref, *, width):
    # x_ref block: (tn, H*W) -- `tn` flattened images; lane position = h*W + w.
    x = x_ref[...].astype(jnp.float32)
    tn, hw = x.shape
    lm = lmask_ref[...]      # (1, H*W): 0.0 where w == 0     (no left neighbour)
    rm = rmask_ref[...]      # (1, H*W): 0.0 where w == W - 1 (no right neighbour)

    # 128-aligned zero halo on both ends of the lane axis.  Vertical neighbours
    # of the first/last image row land in it and read as zero -- this is the
    # conv's zero padding, done in-registers instead of as an HBM pad pass.
    halo = ((width + 128) // 128) * 128           # >= width + 1, lane aligned
    zpad = jnp.zeros((tn, halo), jnp.float32)
    xp = jnp.concatenate([zpad, x, zpad], axis=1)

    def nbr(dr, dc):
        # value of x[h + dr, w + dc] at flattened position p = h*W + w
        off = halo + dr * width + dc
        return xp[:, off:off + hw]

    # Horizontal (dc != 0) neighbours wrap across image rows in the flattened
    # layout; lm/rm zero them at w == 0 / w == W-1 (matching the zero padding).
    x_u, x_d = nbr(-1, 0), nbr(1, 0)
    x_l, x_r = nbr(0, -1) * lm, nbr(0, 1) * rm
    x_ul, x_ur = nbr(-1, -1) * lm, nbr(-1, 1) * rm
    x_dl, x_dr = nbr(1, -1) * lm, nbr(1, 1) * rm

    # Cross-correlation with Kx = [[-1,0,1],[-2,0,2],[-1,0,1]] and Ky = Kx^T.
    gx = (x_ur - x_ul) + 2.0 * (x_r - x_l) + (x_dr - x_dl)
    gy = (x_dl - x_ul) + 2.0 * (x_d - x_u) + (x_dr - x_ur)
    o_ref[...] = jnp.sqrt(gx * gx + gy * gy).astype(o_ref.dtype)


def sobel(x):
    """x: (B, C, H, W) -> (B, C, H, W) Sobel gradient magnitude."""
    B, C, H, W = x.shape
    N, HW = B * C, H * W
    xf = x.reshape(N, HW)                         # metadata-only reshape

    # Row-boundary validity masks (1.0 / 0.0), shared by every block.
    col = jnp.arange(HW, dtype=jnp.int32) % W
    lmask = (col != 0).astype(jnp.float32).reshape(1, HW)
    rmask = (col != W - 1).astype(jnp.float32).reshape(1, HW)

    # Images per grid step: as many as fit a conservative per-operand VMEM
    # budget (double-buffered), kept a multiple of 8 when tiling the N axis.
    bytes_per_elem = max(jnp.dtype(x.dtype).itemsize, 4)
    budget_bytes = 2 * 1024 * 1024
    tn = max(1, budget_bytes // (HW * bytes_per_elem))
    if tn >= N:
        tn = N
    else:
        tn = max(8, (tn // 8) * 8)
    # TODO(synk): for very large H*W (a single image overflowing the budget),
    # add row tiling with a 2-row halo instead of whole-image flattened blocks.
    grid_n = pl.cdiv(N, tn)

    kernel = functools.partial(_sobel_kernel, width=W)

    out = pl.pallas_call(
        kernel,
        out_shape=jax.ShapeDtypeStruct((N, HW), x.dtype),
        grid_spec=pltpu.PrefetchScalarGridSpec(
            num_scalar_prefetch=0,
            grid=(grid_n,),
            in_specs=[
                pl.BlockSpec((tn, HW), lambda i: (i, 0)),
                pl.BlockSpec((1, HW), lambda i: (0, 0)),
                pl.BlockSpec((1, HW), lambda i: (0, 0)),
            ],
            out_specs=pl.BlockSpec((tn, HW), lambda i: (i, 0)),
        ),
        compiler_params=pltpu.CompilerParams(
            dimension_semantics=("parallel",),
            vmem_limit_bytes=32 * 1024 * 1024,
        ),
    )(xf, lmask, rmask)
    return out.reshape(B, C, H, W)


def _sobel_reference(x):
    """Pure-JAX reference using lax conv (cross-correlation), for validation."""
    B, C, H, W = x.shape
    kx = jnp.array([[-1.0, 0.0, 1.0],
                    [-2.0, 0.0, 2.0],
                    [-1.0, 0.0, 1.0]], dtype=x.dtype)
    ky = kx.T
    dn = lax.conv_dimension_numbers(x.shape, (C, 1, 3, 3), ("NCHW", "OIHW", "NCHW"))

    def conv_with(k):
        w = jnp.broadcast_to(k, (C, 1, 3, 3))
        return lax.conv_general_dilated(
            x, w, window_strides=(1, 1), padding=((1, 1), (1, 1)),
            dimension_numbers=dn, feature_group_count=C)

    gx = conv_with(kx)
    gy = conv_with(ky)
    return jnp.sqrt(gx * gx + gy * gy)


if __name__ == "__main__":
    key = jax.random.PRNGKey(0)
    x = jax.random.uniform(key, (2, 4, 16, 16), dtype=jnp.float32)

    out = jax.block_until_ready(sobel(x))
    ref = jax.block_until_ready(_sobel_reference(x))

    assert out.shape == (2, 4, 16, 16)
    assert out.dtype == x.dtype
    assert jnp.allclose(out, ref, atol=1e-5, rtol=1e-5)
    print("KERNEL_OK")
</pallas_src>

<mosaic_0001>
module attributes {stable_mosaic.version = 11 : i64} {
  func.func @_sobel_kernel(%arg0: i32, %arg1: memref<8x256xf32, #tpu.memory_space<vmem>>, %arg2: memref<1x256xf32, #tpu.memory_space<vmem>>, %arg3: memref<1x256xf32, #tpu.memory_space<vmem>>, %arg4: memref<8x256xf32, #tpu.memory_space<vmem>>) attributes {dimension_semantics = [#tpu.dimension_semantics<parallel>], iteration_bounds = array<i64: 1>, scalar_prefetch = 0 : i64, scratch_operands = 0 : i64, tpu.core_type = #tpu.core_type<tc>, window_params = [{transform_indices = @transform_0, window_bounds = array<i64: 8, 256>}, {pipeline_mode = #tpu.pipeline_mode<synchronous>, transform_indices = @transform_1, window_bounds = array<i64: 1, 256>}, {pipeline_mode = #tpu.pipeline_mode<synchronous>, transform_indices = @transform_2, window_bounds = array<i64: 1, 256>}, {transform_indices = @transform_3, window_bounds = array<i64: 8, 256>}]} {
    %c0 = arith.constant 0 : index
    %c0_0 = arith.constant 0 : index
    %0 = vector.load %arg1[%c0, %c0_0] : memref<8x256xf32, #tpu.memory_space<vmem>>, vector<8x256xf32>
    %c0_1 = arith.constant 0 : index
    %c0_2 = arith.constant 0 : index
    %1 = vector.load %arg2[%c0_1, %c0_2] : memref<1x256xf32, #tpu.memory_space<vmem>>, vector<1x256xf32>
    %c0_3 = arith.constant 0 : index
    %c0_4 = arith.constant 0 : index
    %2 = vector.load %arg3[%c0_3, %c0_4] : memref<1x256xf32, #tpu.memory_space<vmem>>, vector<1x256xf32>
    %cst = arith.constant 0.000000e+00 : f32
    %3 = vector.broadcast %cst : f32 to vector<8x128xf32>
    %4 = tpu.concatenate %3, %0, %3 in 1 : vector<8x128xf32>, vector<8x256xf32>, vector<8x128xf32> -> vector<8x512xf32>
    %5 = vector.extract_strided_slice %4 {offsets = [0, 112], sizes = [8, 256], strides = [1, 1]} : vector<8x512xf32> to vector<8x256xf32>
    %6 = vector.extract_strided_slice %4 {offsets = [0, 144], sizes = [8, 256], strides = [1, 1]} : vector<8x512xf32> to vector<8x256xf32>
    %7 = vector.extract_strided_slice %4 {offsets = [0, 127], sizes = [8, 256], strides = [1, 1]} : vector<8x512xf32> to vector<8x256xf32>
    %8 = vector.broadcast %1 : vector<1x256xf32> to vector<8x256xf32>
    %9 = arith.mulf %7, %8 : vector<8x256xf32>
    %10 = vector.extract_strided_slice %4 {offsets = [0, 129], sizes = [8, 256], strides = [1, 1]} : vector<8x512xf32> to vector<8x256xf32>
    %11 = vector.broadcast %2 : vector<1x256xf32> to vector<8x256xf32>
    %12 = arith.mulf %10, %11 : vector<8x256xf32>
    %13 = vector.extract_strided_slice %4 {offsets = [0, 111], sizes = [8, 256], strides = [1, 1]} : vector<8x512xf32> to vector<8x256xf32>
    %14 = vector.broadcast %1 : vector<1x256xf32> to vector<8x256xf32>
    %15 = arith.mulf %13, %14 : vector<8x256xf32>
    %16 = vector.extract_strided_slice %4 {offsets = [0, 113], sizes = [8, 256], strides = [1, 1]} : vector<8x512xf32> to vector<8x256xf32>
    %17 = vector.broadcast %2 : vector<1x256xf32> to vector<8x256xf32>
    %18 = arith.mulf %16, %17 : vector<8x256xf32>
    %19 = vector.extract_strided_slice %4 {offsets = [0, 143], sizes = [8, 256], strides = [1, 1]} : vector<8x512xf32> to vector<8x256xf32>
    %20 = vector.broadcast %1 : vector<1x256xf32> to vector<8x256xf32>
    %21 = arith.mulf %19, %20 : vector<8x256xf32>
    %22 = vector.extract_strided_slice %4 {offsets = [0, 145], sizes = [8, 256], strides = [1, 1]} : vector<8x512xf32> to vector<8x256xf32>
    %23 = vector.broadcast %2 : vector<1x256xf32> to vector<8x256xf32>
    %24 = arith.mulf %22, %23 : vector<8x256xf32>
    %25 = arith.subf %18, %15 : vector<8x256xf32>
    %26 = arith.subf %12, %9 : vector<8x256xf32>
    %cst_5 = arith.constant 2.000000e+00 : f32
    %27 = vector.broadcast %cst_5 : f32 to vector<8x256xf32>
    %28 = arith.mulf %27, %26 : vector<8x256xf32>
    %29 = arith.addf %25, %28 : vector<8x256xf32>
    %30 = arith.subf %24, %21 : vector<8x256xf32>
    %31 = arith.addf %29, %30 : vector<8x256xf32>
    %32 = arith.subf %21, %15 : vector<8x256xf32>
    %33 = arith.subf %6, %5 : vector<8x256xf32>
    %cst_6 = arith.constant 2.000000e+00 : f32
    %34 = vector.broadcast %cst_6 : f32 to vector<8x256xf32>
    %35 = arith.mulf %34, %33 : vector<8x256xf32>
    %36 = arith.addf %32, %35 : vector<8x256xf32>
    %37 = arith.subf %24, %18 : vector<8x256xf32>
    %38 = arith.addf %36, %37 : vector<8x256xf32>
    %39 = arith.mulf %31, %31 : vector<8x256xf32>
    %40 = arith.mulf %38, %38 : vector<8x256xf32>
    %41 = arith.addf %39, %40 : vector<8x256xf32>
    %42 = math.sqrt %41 : vector<8x256xf32>
    %c0_7 = arith.constant 0 : index
    %c0_8 = arith.constant 0 : index
    %43 = vector.load %arg4[%c0_7, %c0_8] : memref<8x256xf32, #tpu.memory_space<vmem>>, vector<8x256xf32>
    tpu.vector_store %arg4[%c0_7, %c0_8], %42 {strides = array<i32>} : memref<8x256xf32, #tpu.memory_space<vmem>>, vector<8x256xf32>,
    return
  }
  func.func @transform_0(%arg0: i32) -> (i32, i32) {
    %c0_i32 = arith.constant 0 : i32
    %c0_i32_0 = arith.constant 0 : i32
    return %arg0, %c0_i32 : i32, i32
  }
  func.func @transform_1(%arg0: i32) -> (i32, i32) {
    %c0_i32 = arith.constant 0 : i32
    %c0_i32_0 = arith.constant 0 : i32
    %c0_i32_1 = arith.constant 0 : i32
    return %c0_i32, %c0_i32_0 : i32, i32
  }
  func.func @transform_2(%arg0: i32) -> (i32, i32) {
    %c0_i32 = arith.constant 0 : i32
    %c0_i32_0 = arith.constant 0 : i32
    %c0_i32_1 = arith.constant 0 : i32
    return %c0_i32, %c0_i32_0 : i32, i32
  }
  func.func @transform_3(%arg0: i32) -> (i32, i32) {
    %c0_i32 = arith.constant 0 : i32
    %c0_i32_0 = arith.constant 0 : i32
    return %arg0, %c0_i32 : i32, i32
  }
}

</mosaic_0001>

<llo_original>
// kernel: tpu_custom_call.1
$region0: #{tpu_custom_call.1}
  #allocation0 [shape = 'u32[]', space=smem, size = 0x4, offset = 0x4, fixed_abs, tag = 'smem constant byte address 0x4 - core index']
  #allocation1 [shape = 'u32[144,128]{1,0:T(1,128)}', space=vmem, size = 0x12000, scoped, tag = 'internal scratch']
  %s0 = inlined_call_operand.hbm [shape: f32[8,256], index: 0, kind: input, shape index: {}]
  %s1 = inlined_call_operand.hbm [shape: f32[1,256], index: 1, kind: input, shape index: {}]
  %s2 = inlined_call_operand.vmem [shape: f32[1,256], index: 2, kind: input, shape index: {}]
  %s3 = inlined_call_operand.hbm [shape: f32[8,256], index: 3, kind: output, shape index: {}]
  %s4 = sld [smem:[#allocation0]]
  $region30: #{tpu_custom_call.1} parent=0
    _
  %s6 = ssub.s32 1, %s4
  %s7 = scalar_select 0, %s6, %s4
  $region1: #{tpu_custom_call.1} parent=0
    #allocation2 [shape = 'u8[8192]{0}', space=vmem, size = 0x2000, scoped, tag = 'input window, operand 0, single buffered']
    #allocation3 [shape = 's32[1]{0}', space=sflag, size = 0x4, scoped, tag = 'scoped memory for tpu_custom_call.1']
    #allocation4 [shape = 's32[1]{0}', space=sflag, size = 0x4, scoped, tag = 'scoped memory for tpu_custom_call.1']
    #allocation5 [shape = 'u8[1024]{0}', space=vmem, size = 0x400, scoped, tag = 'input window, operand 1, single buffered']
    #allocation6 [shape = 's32[1]{0}', space=sflag, size = 0x4, scoped, tag = 'scoped memory for tpu_custom_call.1']
    #allocation7 [shape = 'u8[8192]{0}', space=vmem, size = 0x2000, scoped, tag = 'output window, operand 0, single buffered']
    %8 = vsyncpa [#allocation3], 0
    %9 = vsyncpa [#allocation6], 0
    %10 = vsyncpa [#allocation4], 0
    // Predicated region
    $region2: #{tpu_custom_call.1} parent=1 // pred_check
      _
    $region3: #{tpu_custom_call.1} parent=1 // pred_check_branch
      %12 = sbr.rel (0) target = $region5
    $region4: #{tpu_custom_call.1} parent=1 // pred_region
      %s14 = ssub.s32 256, 256
      %15 = vsyncadd [#allocation3], %s14
      %s17 = sshll.u32 [#allocation2], 4
      %s18 = int_to_ptr.vmem [resolvable:$true] %s17
      %20 = dma.hbm_to_vmem [thread:$0]  %s0, 256, %s18, [#allocation3]
    $region5: #{tpu_custom_call.1} parent=1 // pred_fallthru
      _
    // Predicated region
    $region6: #{tpu_custom_call.1} parent=1 // pred_check
      _
    $region7: #{tpu_custom_call.1} parent=1 // pred_check_branch
      %22 = sbr.rel (0) target = $region9
    $region8: #{tpu_custom_call.1} parent=1 // pred_region
      %s24 = ssub.s32 32, 32
      %25 = vsyncadd [#allocation6], %s24
      %s27 = sshll.u32 [#allocation5], 4
      %s28 = int_to_ptr.vmem [resolvable:$true] %s27
      %30 = dma.hbm_to_vmem [thread:$0]  %s1, 32, %s28, [#allocation6]
    $region9: #{tpu_custom_call.1} parent=1 // pred_fallthru
      _
    // Predicated region
    $region10: #{tpu_custom_call.1} parent=1 // pred_check
      _
    $region11: #{tpu_custom_call.1} parent=1 // pred_check_branch
      %32 = sbr.rel (0) target = $region13
    $region12: #{tpu_custom_call.1} parent=1 // pred_region
      _
    $region13: #{tpu_custom_call.1} parent=1 // pred_fallthru
      _
    // Predicated region
    $region14: #{tpu_custom_call.1} parent=1 // pred_check
      _
    $region15: #{tpu_custom_call.1} parent=1 // pred_check_branch
      %34 = sbr.rel (0) target = $region17
    $region16: #{tpu_custom_call.1} parent=1 // pred_region
      %35 = dma.done [#allocation3], 256
    $region17: #{tpu_custom_call.1} parent=1 // pred_fallthru
      _
    // Predicated region
    $region18: #{tpu_custom_call.1} parent=1 // pred_check
      _
    $region19: #{tpu_custom_call.1} parent=1 // pred_check_branch
      %37 = sbr.rel (0) target = $region21
    $region20: #{tpu_custom_call.1} parent=1 // pred_region
      %38 = dma.done [#allocation6], 32
    $region21: #{tpu_custom_call.1} parent=1 // pred_fallthru
      _
    %v39 = vld [vmem:[#allocation2] sm:$0xff]
    %v40 = vld [vmem:[#allocation2 + $0x8] sm:$0xff]
    %v41 = vld [vmem:[#allocation5] sm:$0x3]
    %v42 = vld [vmem:[%s2] sm:$0x3]
    %v44 = vlaneseq
    %v45 = vshrl.u32 %v44, 7
    %v46 = vsub.s32 0, %v45
    %v47 = vrot.slane %v41, %v46
    %v48 = vlaneseq
    %v49 = vshrl.u32 %v48, 7
    %v50 = vsub.s32 1, %v49
    %v51 = vrot.slane %v41, %v50
    %52 = vrot.lane.b32.xlu0 %v47, 127
    %v53 = vpop.permute.xlu0 %52
    %54 = vrot.lane.b32.xlu0 %v51, 127
    %v55 = vpop.permute.xlu0 %54
    %vm56 = vcmask 1039360
    %v57 = vsel %vm56, %v53, %v55
    %v61 = vmul.f32 %v53, 0.0
    %v62 = vmul.f32 %v39, %v57
    %v63 = vmul.f32 %v40, %v55
    %v65 = vlaneseq
    %v66 = vshrl.u32 %v65, 7
    %v67 = vsub.s32 0, %v66
    %v68 = vrot.slane %v42, %v67
    %v69 = vlaneseq
    %v70 = vshrl.u32 %v69, 7
    %v71 = vsub.s32 1, %v70
    %v72 = vrot.slane %v42, %v71
    %73 = vrot.lane.b32.xlu0 %v68, 1
    %v74 = vpop.permute.xlu0 %73
    %75 = vrot.lane.b32.xlu0 %v72, 1
    %v76 = vpop.permute.xlu0 %75
    %vm77 = vcmask 7168
    %v78 = vsel %vm77, %v74, %v76
    %v82 = vmul.f32 %v39, %v74
    %v83 = vmul.f32 %v40, %v78
    %v84 = vmul.f32 %v76, 0.0
    %85 = vrot.lane.b32.xlu0 %v47, 111
    %v86 = vpop.permute.xlu0 %85
    %87 = vrot.lane.b32.xlu0 %v51, 111
    %v88 = vpop.permute.xlu0 %87
    %vm89 = vcmask 908288
    %v90 = vsel %vm89, %v86, %v88
    %v94 = vmul.f32 %v86, 0.0
    %v95 = vmul.f32 %v39, %v90
    %v96 = vmul.f32 %v40, %v88
    %97 = vrot.lane.b32.xlu0 %v68, 113
    %v98 = vpop.permute.xlu0 %97
    %99 = vrot.lane.b32.xlu0 %v72, 113
    %v100 = vpop.permute.xlu0 %99
    %vm101 = vcmask 924672
    %v102 = vsel %vm101, %v98, %v100
    %v106 = vmul.f32 %v98, 0.0
    %v107 = vmul.f32 %v39, %v102
    %v108 = vmul.f32 %v40, %v100
    %109 = vrot.lane.b32.xlu0 %v47, 15
    %v110 = vpop.permute.xlu0 %109
    %111 = vrot.lane.b32.xlu0 %v51, 15
    %v112 = vpop.permute.xlu0 %111
    %vm113 = vcmask 121856
    %v114 = vsel %vm113, %v110, %v112
    %v118 = vmul.f32 %v39, %v110
    %v119 = vmul.f32 %v40, %v114
    %v120 = vmul.f32 %v112, 0.0
    %121 = vrot.lane.b32.xlu0 %v68, 17
    %v122 = vpop.permute.xlu0 %121
    %123 = vrot.lane.b32.xlu0 %v72, 17
    %v124 = vpop.permute.xlu0 %123
    %vm125 = vcmask 138240
    %v126 = vsel %vm125, %v122, %v124
    %v130 = vmul.f32 %v39, %v122
    %v131 = vmul.f32 %v40, %v126
    %v132 = vmul.f32 %v124, 0.0
    %136 = vrot.lane.b32.xlu0 %v94, 2
    %v137 = vpop.permute.xlu0 %136
    %138 = vrot.lane.b32.xlu0 %v95, 2
    %v139 = vpop.permute.xlu0 %138
    %140 = vrot.lane.b32.xlu0 %v96, 2
    %v141 = vpop.permute.xlu0 %140
    %vm142 = vcmask 15360
    %v143 = vsel %vm142, %v137, %v139
    %v144 = vsel %vm142, %v139, %v141
    %v148 = vsub.f32 %v106, %v137
    %v149 = vsub.f32 %v107, %v143
    %v150 = vsub.f32 %v108, %v144
    %154 = vrot.lane.b32.xlu0 %v61, 2
    %v155 = vpop.permute.xlu0 %154
    %156 = vrot.lane.b32.xlu0 %v62, 2
    %v157 = vpop.permute.xlu0 %156
    %158 = vrot.lane.b32.xlu0 %v63, 2
    %v159 = vpop.permute.xlu0 %158
    %v160 = vsel %vm142, %v155, %v157
    %v161 = vsel %vm142, %v157, %v159
    %v165 = vsub.f32 %v82, %v160
    %v166 = vsub.f32 %v83, %v161
    %v167 = vsub.f32 %v84, %v159
    %v168 = vmul.f32 %v165, 2.0
    %v169 = vmul.f32 %v166, 2.0
    %v170 = vmul.f32 %v167, 2.0
    %174 = vrot.lane.b32.xlu0 %v168, 112
    %v175 = vpop.permute.xlu0 %174
    %176 = vrot.lane.b32.xlu0 %v169, 112
    %v177 = vpop.permute.xlu0 %176
    %178 = vrot.lane.b32.xlu0 %v170, 112
    %v179 = vpop.permute.xlu0 %178
    %vm180 = vcmask 916480
    %v181 = vsel %vm180, %v175, %v177
    %v182 = vsel %vm180, %v177, %v179
    %v186 = vadd.f32 %v148, %v175
    %v187 = vadd.f32 %v149, %v181
    %v188 = vadd.f32 %v150, %v182
    %192 = vrot.lane.b32.xlu0 %v118, 2
    %v193 = vpop.permute.xlu0 %192
    %194 = vrot.lane.b32.xlu0 %v119, 2
    %v195 = vpop.permute.xlu0 %194
    %196 = vrot.lane.b32.xlu0 %v120, 2
    %v197 = vpop.permute.xlu0 %196
    %v198 = vsel %vm142, %v193, %v195
    %v199 = vsel %vm142, %v195, %v197
    %v203 = vsub.f32 %v130, %v193
    %v204 = vsub.f32 %v131, %v198
    %v205 = vsub.f32 %v132, %v199
    %209 = vrot.lane.b32.xlu0 %v203, 96
    %v210 = vpop.permute.xlu0 %209
    %211 = vrot.lane.b32.xlu0 %v204, 96
    %v212 = vpop.permute.xlu0 %211
    %213 = vrot.lane.b32.xlu0 %v205, 96
    %v214 = vpop.permute.xlu0 %213
    %vm215 = vcmask 785408
    %v216 = vsel %vm215, %v210, %v212
    %v217 = vsel %vm215, %v212, %v214
    %v221 = vadd.f32 %v186, %v210
    %v222 = vadd.f32 %v187, %v216
    %v223 = vadd.f32 %v188, %v217
    %224 = vrot.lane.b32.xlu0 %v94, 32
    %v225 = vpop.permute.xlu0 %224
    %226 = vrot.lane.b32.xlu0 %v95, 32
    %v227 = vpop.permute.xlu0 %226
    %228 = vrot.lane.b32.xlu0 %v96, 32
    %v229 = vpop.permute.xlu0 %228
    %vm230 = vcmask 261120
    %v231 = vsel %vm230, %v225, %v227
    %v232 = vsel %vm230, %v227, %v229
    %v236 = vsub.f32 %v118, %v231
    %v237 = vsub.f32 %v119, %v232
    %v238 = vsub.f32 %v120, %v229
    %242 = vrot.lane.b32.xlu0 0.0, 32
    %v243 = vpop.permute.xlu0 %242
    %244 = vrot.lane.b32.xlu0 %v39, 32
    %v245 = vpop.permute.xlu0 %244
    %246 = vrot.lane.b32.xlu0 %v40, 32
    %v247 = vpop.permute.xlu0 %246
    %v248 = vsel %vm230, %v243, %v245
    %v249 = vsel %vm230, %v245, %v247
    %v253 = vsub.f32 %v39, %v248
    %v254 = vsub.f32 %v40, %v249
    %v255 = vsub.f32 0.0, %v247
    %v256 = vmul.f32 %v253, 2.0
    %v257 = vmul.f32 %v254, 2.0
    %v258 = vmul.f32 %v255, 2.0
    %262 = vrot.lane.b32.xlu0 %v256, 127
    %v263 = vpop.permute.xlu0 %262
    %264 = vrot.lane.b32.xlu0 %v257, 127
    %v265 = vpop.permute.xlu0 %264
    %266 = vrot.lane.b32.xlu0 %v258, 127
    %v267 = vpop.permute.xlu0 %266
    %v268 = vsel %vm56, %v263, %v265
    %v269 = vsel %vm56, %v265, %v267
    %v273 = vadd.f32 %v236, %v268
    %v274 = vadd.f32 %v237, %v269
    %v275 = vadd.f32 %v238, %v267
    %279 = vrot.lane.b32.xlu0 %v106, 32
    %v280 = vpop.permute.xlu0 %279
    %281 = vrot.lane.b32.xlu0 %v107, 32
    %v282 = vpop.permute.xlu0 %281
    %283 = vrot.lane.b32.xlu0 %v108, 32
    %v284 = vpop.permute.xlu0 %283
    %v285 = vsel %vm230, %v280, %v282
    %v286 = vsel %vm230, %v282, %v284
    %v290 = vsub.f32 %v130, %v285
    %v291 = vsub.f32 %v131, %v286
    %v292 = vsub.f32 %v132, %v284
    %296 = vrot.lane.b32.xlu0 %v290, 126
    %v297 = vpop.permute.xlu0 %296
    %298 = vrot.lane.b32.xlu0 %v291, 126
    %v299 = vpop.permute.xlu0 %298
    %300 = vrot.lane.b32.xlu0 %v292, 126
    %v301 = vpop.permute.xlu0 %300
    %vm302 = vcmask 1031168
    %v303 = vsel %vm302, %v297, %v299
    %v304 = vsel %vm302, %v299, %v301
    %v308 = vadd.f32 %v273, %v303
    %v309 = vadd.f32 %v274, %v304
    %v310 = vadd.f32 %v275, %v301
    %v311 = vmul.f32 %v221, %v221
    %v312 = vmul.f32 %v222, %v222
    %v313 = vmul.f32 %v223, %v223
    %v314 = vmul.f32 %v308, %v308
    %v315 = vmul.f32 %v309, %v309
    %v316 = vmul.f32 %v310, %v310
    %320 = vrot.lane.b32.xlu0 %v314, 98
    %v321 = vpop.permute.xlu0 %320
    %322 = vrot.lane.b32.xlu0 %v315, 98
    %v323 = vpop.permute.xlu0 %322
    %324 = vrot.lane.b32.xlu0 %v316, 98
    %v325 = vpop.permute.xlu0 %324
    %vm326 = vcmask 801792
    %v327 = vsel %vm326, %v321, %v323
    %v328 = vsel %vm326, %v323, %v325
    %v332 = vadd.f32 %v311, %v321
    %v333 = vadd.f32 %v312, %v327
    %v334 = vadd.f32 %v313, %v328
    %v335 = vrsqrt.pop %v332
    %v336 = vmul.f32 %v332, %v335
    %vm337 = vcmp.eq.f32.partialorder %v332, inf
    %v338 = vsel %vm337, %v332, %v336
    %vm339 = vcmp.eq.f32.partialorder %v332, 0.0
    %v340 = vand.u32 %v332, 2147483648
    %v341 = vsel %vm339, %v340, %v338
    %v342 = vrsqrt.pop %v333
    %v343 = vmul.f32 %v333, %v342
    %vm344 = vcmp.eq.f32.partialorder %v333, inf
    %v345 = vsel %vm344, %v333, %v343
    %vm346 = vcmp.eq.f32.partialorder %v333, 0.0
    %v347 = vand.u32 %v333, 2147483648
    %v348 = vsel %vm346, %v347, %v345
    %v349 = vrsqrt.pop %v334
    %v350 = vmul.f32 %v334, %v349
    %vm351 = vcmp.eq.f32.partialorder %v334, inf
    %v352 = vsel %vm351, %v334, %v350
    %vm353 = vcmp.eq.f32.partialorder %v334, 0.0
    %v354 = vand.u32 %v334, 2147483648
    %v355 = vsel %vm353, %v354, %v352
    %359 = vrot.lane.b32.xlu0 %v341, 15
    %v360 = vpop.permute.xlu0 %359
    %361 = vrot.lane.b32.xlu0 %v348, 15
    %v362 = vpop.permute.xlu0 %361
    %363 = vrot.lane.b32.xlu0 %v355, 15
    %v364 = vpop.permute.xlu0 %363
    %v365 = vsel %vm113, %v360, %v362
    %v366 = vsel %vm113, %v362, %v364
    %369 = vst [vmem:[#allocation7] sm:$0xff] %v365
    %370 = vst [vmem:[#allocation7 + $0x8] sm:$0xff] %v366
    // Predicated region
    $region22: #{tpu_custom_call.1} parent=1 // pred_check
      _
    $region23: #{tpu_custom_call.1} parent=1 // pred_check_branch
      %372 = sbr.rel (0) target = $region25
    $region24: #{tpu_custom_call.1} parent=1 // pred_region
      %s374 = ssub.s32 256, 256
      %375 = vsyncadd [#allocation4], %s374
      %s377 = sshll.u32 [#allocation7], 4
      %s378 = int_to_ptr.vmem [resolvable:$true] %s377
      %380 = dma.vmem_to_hbm [thread:$0]  %s378, 256, %s3, [#allocation4]
    $region25: #{tpu_custom_call.1} parent=1 // pred_fallthru
      _
    // Predicated region
    $region26: #{tpu_custom_call.1} parent=1 // pred_check
      _
    $region27: #{tpu_custom_call.1} parent=1 // pred_check_branch
      %382 = sbr.rel (0) target = $region29
    $region28: #{tpu_custom_call.1} parent=1 // pred_region
      %383 = dma.done [#allocation4], 256
    $region29: #{tpu_custom_call.1} parent=1 // pred_fallthru
      _
    %384 = vsyncpa [#allocation3], 1
    %385 = vsyncpa [#allocation6], 1
    %386 = vsyncpa [#allocation4], 1

</llo_original>
